<compile_context>
chip_gen: v7x
topology: tpu7x:2x2x1
jax: 0.10.0
libtpu: 0.0.40
codegen_flags: <defaults>
</compile_context>

<pallas_src>
import jax
import jax.numpy as jnp
from jax.experimental import pallas as pl
from jax.experimental.pallas import tpu as pltpu


def _round_up(x, m):
    return ((x + m - 1) // m) * m


def _sublane_multiple(dtype):
    # f32 -> 8 sublanes, bf16 -> 16, int8/fp8 -> 32 (sub-32-bit packs along sublanes).
    return 8 * max(1, 4 // jnp.dtype(dtype).itemsize)


def _hypernet_kernel(emb_ref, w_ref, out_ref):
    # emb: (Mp, P+1) resident across N tiles; w: (P+1, TN) tile; out: (Mp, TN).
    # Bias is folded in as the last row of w / ones column of emb.
    out_ref[...] = jnp.dot(
        emb_ref[...], w_ref[...], preferred_element_type=jnp.float32
    ).astype(out_ref.dtype)


def pack_hypernet_params(w_gen, b_gen, w_bias, b_bias, param_dtype=None):
    """One-time parameter packing (call at init, NOT per forward):
      - fuse weight/bias generators along the output axis   -> (P, n_w + n_b)
      - fold both generator biases in as one extra input row -> (P + 1, N)
      - pad the fused output axis to a multiple of 128 lanes -> (P + 1, Npad)
    Returns (w_aug_padded, n_total)."""
    w_packed = jnp.concatenate([w_gen, w_bias], axis=1)
    b_packed = jnp.concatenate([b_gen.reshape(-1), b_bias.reshape(-1)]).reshape(1, -1)
    w_aug = jnp.concatenate([w_packed, b_packed], axis=0)          # (P+1, N)
    if param_dtype is not None:
        w_aug = w_aug.astype(param_dtype)
    n = w_aug.shape[1]
    n_pad = _round_up(n, 128)
    if n_pad != n:
        w_aug = jnp.pad(w_aug, ((0, 0), (0, n_pad - n)))
    return w_aug, n


def _choose_num_tiles(q, desired):
    """Smallest divisor of q (q = Npad/128) that is >= desired; q itself as fallback."""
    desired = min(max(desired, 1), q)
    for d in range(desired, q + 1):
        if q % d == 0:
            return d
    return q


def _fused_hypernet_matmul(emb, w_aug_padded, *, out_dtype=jnp.float32,
                           vmem_budget_bytes=24 << 20, tn_max=16384):
    """emb: (M, P); w_aug_padded: (P+1, Npad) pre-packed (bias row folded, lane-padded).
    Returns (M, Npad) in out_dtype; caller slices off the valid columns."""
    M, P = emb.shape
    P1, Npad = w_aug_padded.shape
    assert P1 == P + 1, "packed params must have one extra (bias) input row"
    assert Npad % 128 == 0

    emb_item = jnp.dtype(emb.dtype).itemsize
    w_item = jnp.dtype(w_aug_padded.dtype).itemsize
    out_item = jnp.dtype(out_dtype).itemsize

    # Round M up so input reads / output stores are fully unmasked for the dtypes used.
    sub = max(_sublane_multiple(out_dtype), _sublane_multiple(emb.dtype))
    Mp = _round_up(max(M, 1), sub)

    # --- tile the fused output axis ---
    # Big enough tiles to amortize the ~0.35us per-grid-step overhead (MiB-scale DMAs),
    # small enough that double-buffered blocks fit the VMEM budget, and a divisor of
    # Npad so the pre-packed weight never needs per-call re-padding.
    q = Npad // 128
    fixed = 2 * Mp * P1 * emb_item                      # resident emb (2 buffers)
    per_lane = 2 * (P1 * w_item + Mp * out_item)        # weight tile + output tile (2 bufs)
    tn_cap = max(128, ((max(vmem_budget_bytes - fixed, 0) // max(per_lane, 1)) // 128) * 128)
    tn_cap = min(tn_cap, tn_max)
    desired_tiles = -(-Npad // tn_cap)
    if desired_tiles == 1 and q >= 2:
        desired_tiles = 2        # >=2 grid steps so the "parallel" axis can split across TCs
    num_tiles = _choose_num_tiles(q, desired_tiles)
    tn = (q // num_tiles) * 128

    # Per-call embedding prep: fold the bias via a ones column, pad rows to Mp.
    emb1 = jnp.concatenate([emb, jnp.ones((M, 1), emb.dtype)], axis=1)   # (M, P+1)
    if Mp != M:
        emb1 = jnp.pad(emb1, ((0, Mp - M), (0, 0)))

    needed_vmem = fixed + per_lane * tn
    vmem_limit = int(min(max(needed_vmem + (4 << 20), 32 << 20), 48 << 20))

    cost = pl.CostEstimate(
        flops=2 * Mp * P1 * Npad,
        transcendentals=0,
        bytes_accessed=Mp * P1 * emb_item + P1 * Npad * w_item + Mp * Npad * out_item,
    )

    out = pl.pallas_call(
        _hypernet_kernel,
        out_shape=jax.ShapeDtypeStruct((Mp, Npad), out_dtype),
        grid=(num_tiles,),
        in_specs=[
            pl.BlockSpec((Mp, P1), lambda j: (0, 0)),   # embeddings (+ones) resident
            pl.BlockSpec((P1, tn), lambda j: (0, j)),   # fused weight, tiled along N
        ],
        out_specs=pl.BlockSpec((Mp, tn), lambda j: (0, j)),
        compiler_params=pltpu.CompilerParams(
            dimension_semantics=("parallel",),          # independent N tiles (megacore)
            vmem_limit_bytes=vmem_limit,
        ),
        cost_estimate=cost,
    )(emb1, w_aug_padded)

    return out[:M]


def adapter_layers_hypernet(embeddings, packed_params, input_dim, output_dim,
                            out_dtype=jnp.float32):
    """Module-semantics forward for a single task embedding.

    embeddings: (P,) or (1, P); packed_params from pack_hypernet_params() (done once at init).
    Returns (weight (input_dim, output_dim), bias (input_dim,))."""
    w_aug, _ = packed_params
    emb = embeddings.reshape(1, -1)
    out = _fused_hypernet_matmul(emb, w_aug, out_dtype=out_dtype)
    n_w = input_dim * output_dim
    weight = out[0, :n_w].reshape(input_dim, output_dim)     # .view(input_dim, output_dim)
    bias = out[0, n_w:n_w + input_dim]                       # .view(-1)
    return weight, bias


def adapter_layers_hypernet_batched(embeddings, packed_params, input_dim, output_dim,
                                    out_dtype=jnp.float32):
    """Batched variant: generate weights/biases for L adapter layers in one call.

    embeddings: (L, P).  Returns (weights (L, input_dim, output_dim), biases (L, input_dim)).
    Fills MXU sublanes and reads the fused weight from HBM once instead of L times."""
    w_aug, _ = packed_params
    L = embeddings.shape[0]
    out = _fused_hypernet_matmul(embeddings, w_aug, out_dtype=out_dtype)
    n_w = input_dim * output_dim
    weights = out[:, :n_w].reshape(L, input_dim, output_dim)
    biases = out[:, n_w:n_w + input_dim]
    return weights, biases


if __name__ == "__main__":
    # Small, forward-consistent shapes.
    projected_task_embedding_dim = 32   # config.projected_task_embedding_dim
    input_dim = 16
    output_dim = 8
    num_layers = 6                      # batched path: one embedding per adapter layer

    key = jax.random.PRNGKey(0)
    k_emb, k_wg, k_bg, k_wb, k_bb, k_batch = jax.random.split(key, 6)

    # Deterministic synthetic parameters (shapes from __init__).
    embeddings = jax.random.normal(k_emb, (projected_task_embedding_dim,), jnp.float32)
    w_gen = 0.02 * jax.random.normal(
        k_wg, (projected_task_embedding_dim, input_dim * output_dim), jnp.float32)
    b_gen = 0.02 * jax.random.normal(k_bg, (input_dim * output_dim,), jnp.float32)
    w_bias = 0.02 * jax.random.normal(
        k_wb, (projected_task_embedding_dim, input_dim), jnp.float32)
    b_bias = 0.02 * jax.random.normal(k_bb, (input_dim,), jnp.float32)

    # One-time packing (init-time, cached across all forward calls).
    packed = pack_hypernet_params(w_gen, b_gen, w_bias, b_bias)
    jax.block_until_ready(packed[0])

    # --- single-embedding forward (original module semantics) ---
    weight, bias = adapter_layers_hypernet(
        embeddings, packed, input_dim, output_dim)
    jax.block_until_ready((weight, bias))

    ref_w = (embeddings @ w_gen + b_gen).reshape(input_dim, output_dim)
    ref_b = (embeddings @ w_bias + b_bias).reshape(-1)
    assert weight.shape == (input_dim, output_dim)
    assert bias.shape == (input_dim,)
    assert jnp.allclose(weight, ref_w, atol=1e-5, rtol=1e-5)
    assert jnp.allclose(bias, ref_b, atol=1e-5, rtol=1e-5)

    # --- batched forward (all adapter layers in one kernel call) ---
    emb_batch = jax.random.normal(
        k_batch, (num_layers, projected_task_embedding_dim), jnp.float32)
    weights_b, biases_b = adapter_layers_hypernet_batched(
        emb_batch, packed, input_dim, output_dim)
    jax.block_until_ready((weights_b, biases_b))

    ref_wb = (emb_batch @ w_gen + b_gen).reshape(num_layers, input_dim, output_dim)
    ref_bb = emb_batch @ w_bias + b_bias
    assert weights_b.shape == (num_layers, input_dim, output_dim)
    assert biases_b.shape == (num_layers, input_dim)
    assert jnp.allclose(weights_b, ref_wb, atol=1e-5, rtol=1e-5)
    assert jnp.allclose(biases_b, ref_bb, atol=1e-5, rtol=1e-5)

    print("KERNEL_OK")
</pallas_src>

<mosaic_0001>
module attributes {stable_mosaic.version = 11 : i64} {
  func.func @_hypernet_kernel(%arg0: i32, %arg1: memref<8x33xf32, #tpu.memory_space<vmem>>, %arg2: memref<33x128xf32, #tpu.memory_space<vmem>>, %arg3: memref<8x128xf32, #tpu.memory_space<vmem>>) attributes {dimension_semantics = [#tpu.dimension_semantics<parallel>], iteration_bounds = array<i64: 2>, scalar_prefetch = 0 : i64, scratch_operands = 0 : i64, tpu.core_type = #tpu.core_type<tc>, window_params = [{pipeline_mode = #tpu.pipeline_mode<synchronous>, transform_indices = @transform_0, window_bounds = array<i64: 8, 33>}, {transform_indices = @transform_1, window_bounds = array<i64: 33, 128>}, {transform_indices = @transform_2, window_bounds = array<i64: 8, 128>}]} {
    %c0 = arith.constant 0 : index
    %c0_0 = arith.constant 0 : index
    %0 = vector.load %arg1[%c0, %c0_0] : memref<8x33xf32, #tpu.memory_space<vmem>>, vector<8x33xf32>
    %c0_1 = arith.constant 0 : index
    %c0_2 = arith.constant 0 : index
    %1 = vector.load %arg2[%c0_1, %c0_2] : memref<33x128xf32, #tpu.memory_space<vmem>>, vector<33x128xf32>
    %cst = arith.constant dense<0.000000e+00> : vector<8x128xf32>
    %2 = tpu.matmul %0, %1, %cst {dimension_numbers = #tpu.dot_dimension_numbers<[1], [0], [0], [1], [0, 0, 1, 1], [], []>} : vector<8x33xf32>, vector<33x128xf32>, vector<8x128xf32> -> vector<8x128xf32>
    %c0_3 = arith.constant 0 : index
    %c0_4 = arith.constant 0 : index
    %3 = vector.load %arg3[%c0_3, %c0_4] : memref<8x128xf32, #tpu.memory_space<vmem>>, vector<8x128xf32>
    tpu.vector_store %arg3[%c0_3, %c0_4], %2 {strides = array<i32>} : memref<8x128xf32, #tpu.memory_space<vmem>>, vector<8x128xf32>,
    return
  }
  func.func @transform_0(%arg0: i32) -> (i32, i32) {
    %c0_i32 = arith.constant 0 : i32
    %c0_i32_0 = arith.constant 0 : i32
    %c0_i32_1 = arith.constant 0 : i32
    return %c0_i32, %c0_i32_0 : i32, i32
  }
  func.func @transform_1(%arg0: i32) -> (i32, i32) {
    %c0_i32 = arith.constant 0 : i32
    %c0_i32_0 = arith.constant 0 : i32
    return %c0_i32, %arg0 : i32, i32
  }
  func.func @transform_2(%arg0: i32) -> (i32, i32) {
    %c0_i32 = arith.constant 0 : i32
    %c0_i32_0 = arith.constant 0 : i32
    return %c0_i32, %arg0 : i32, i32
  }
}

</mosaic_0001>

<llo_original>
// kernel: tpu_custom_call.1
$region0: #{tpu_custom_call.1}
  #allocation0 [shape = 'u32[]', space=smem, size = 0x4, offset = 0x4, fixed_abs, tag = 'smem constant byte address 0x4 - core index']
  #allocation1 [shape = 'u32[144,128]{1,0:T(1,128)}', space=vmem, size = 0x12000, scoped, tag = 'internal scratch']
  %s0 = inlined_call_operand.hbm [shape: f32[8,33], index: 0, kind: input, shape index: {}]
  %s1 = inlined_call_operand.hbm [shape: f32[33,256], index: 1, kind: input, shape index: {}]
  %s2 = inlined_call_operand.hbm [shape: f32[8,256], index: 2, kind: output, shape index: {}]
  %s3 = sld [smem:[#allocation0]]
  $region49: #{tpu_custom_call.1} parent=0
    _
  %s5 = ssub.s32 1, %s3
  %s6 = scalar_select 0, %s5, %s3
  $region1: #{tpu_custom_call.1} parent=0
    #allocation2 [shape = 'u8[4096]{0}', space=vmem, size = 0x1000, scoped, tag = 'input window, operand 0, single buffered']
    #allocation3 [shape = 's32[2]{0}', space=sflag, size = 0x8, scoped, tag = 'scoped memory for tpu_custom_call.1']
    #allocation4 [shape = 's32[2]{0}', space=sflag, size = 0x8, scoped, tag = 'scoped memory for tpu_custom_call.1']
    #allocation5 [shape = 'u8[40960]{0}', space=vmem, size = 0xa000, scoped, tag = 'input window, operand 1']
    #allocation6 [shape = 's32[2]{0}', space=sflag, size = 0x8, scoped, tag = 'scoped memory for tpu_custom_call.1']
    #allocation7 [shape = 'u8[8192]{0}', space=vmem, size = 0x2000, scoped, tag = 'output window, operand 0']
    %7 = vsyncpa [#allocation3], 0
    %8 = vsyncpa [#allocation6], 0
    %s9 = scalar_lea.sflag [#allocation6], 1
    %10 = vsyncpa %s9, 0
    %11 = vsyncpa [#allocation4], 0
    %s12 = scalar_lea.sflag [#allocation4], 1
    %13 = vsyncpa %s12, 0
    loop: start=0, step=1, limit=4
    $region2: #{tpu_custom_call.1} parent=1 // loop_pre_header
      _
    $region3: #{tpu_custom_call.1} parent=1 // loop_header
      %s15 = sphi 0, %s19
      %p16 = scmp.ge.s32.totalorder %s15, 4
      %s23 = sphi 0, %s23
      %s25 = sphi 0, %s23
      %s26 = sphi 0, %s25
      %s40 = sphi 0, %s26
      %s46 = sphi 0, %s48
      %s49 = sphi 0, %s46
      %s50 = sphi 0, %s49
      %s66 = sphi 0, %s50
      %s72 = sphi 0, %s74
      %s75 = sphi 0, %s72
      %s76 = sphi 0, %s75
      %s92 = sphi 0, %s76
    $region4: #{tpu_custom_call.1} parent=1 // loop_header_branch
      %18 = sbr.rel (%p16) target = $region8
    $region5: #{tpu_custom_call.1} parent=1 // loop_body
      %s20 = ssub.s32 %s15, 1
      %s21 = ssub.s32 %s15, 2
      %s22 = sadd.s32 %s15, 1
      %s24 = sadd.s32 %s23, 1
      %p27 = scmp.eq.s32.totalorder %s15, 1
      %p28 = scmp.ne.s32.totalorder %s23, %s25
      %p29 = scmp.eq.s32.totalorder %s15, 0
      %p30 = por %p28, %p29
      %p31 = scmp.ne.s32.totalorder %s23, %s25
      %p32 = scmp.eq.s32.totalorder %s20, 1
      %p33 = por %p31, %p32
      %p34 = scmp.ne.s32.totalorder %s25, %s26
      %p35 = scmp.eq.s32.totalorder %s20, 0
      %p36 = por %p34, %p35
      %p37 = scmp.ne.s32.totalorder %s25, %s26
      %p38 = scmp.eq.s32.totalorder %s21, 1
      %p39 = por %p37, %p38
      %p41 = scmp.ne.s32.totalorder %s26, %s40
      %p42 = scmp.eq.s32.totalorder %s21, 0
      %p43 = por %p41, %p42
      %s44 = ssub.s32 %s15, %s22
      %p45 = scmp.eq.s32.totalorder %s44, 0
      %s47 = sadd.s32 %s46, 1
      %s48 = scalar_select %p45, %s46, %s47
      %p51 = pneg %p45
      %p52 = scmp.eq.s32.totalorder %s15, 1
      %p53 = por %p51, %p52
      %p54 = scmp.ne.s32.totalorder %s46, %s49
      %p55 = scmp.eq.s32.totalorder %s15, 0
      %p56 = por %p54, %p55
      %p57 = scmp.ne.s32.totalorder %s46, %s49
      %p58 = scmp.eq.s32.totalorder %s20, 1
      %p59 = por %p57, %p58
      %p60 = scmp.ne.s32.totalorder %s49, %s50
      %p61 = scmp.eq.s32.totalorder %s20, 0
      %p62 = por %p60, %p61
      %p63 = scmp.ne.s32.totalorder %s49, %s50
      %p64 = scmp.eq.s32.totalorder %s21, 1
      %p65 = por %p63, %p64
      %p67 = scmp.ne.s32.totalorder %s50, %s66
      %p68 = scmp.eq.s32.totalorder %s21, 0
      %p69 = por %p67, %p68
      %s70 = ssub.s32 %s15, %s22
      %p71 = scmp.eq.s32.totalorder %s70, 0
      %s73 = sadd.s32 %s72, 1
      %s74 = scalar_select %p71, %s72, %s73
      %p77 = pneg %p71
      %p78 = scmp.eq.s32.totalorder %s15, 1
      %p79 = por %p77, %p78
      %p80 = scmp.ne.s32.totalorder %s72, %s75
      %p81 = scmp.eq.s32.totalorder %s15, 0
      %p82 = por %p80, %p81
      %p83 = scmp.ne.s32.totalorder %s72, %s75
      %p84 = scmp.eq.s32.totalorder %s20, 1
      %p85 = por %p83, %p84
      %p86 = scmp.ne.s32.totalorder %s75, %s76
      %p87 = scmp.eq.s32.totalorder %s20, 0
      %p88 = por %p86, %p87
      %p89 = scmp.ne.s32.totalorder %s75, %s76
      %p90 = scmp.eq.s32.totalorder %s21, 1
      %p91 = por %p89, %p90
      %p93 = scmp.ne.s32.totalorder %s76, %s92
      %p94 = scmp.eq.s32.totalorder %s21, 0
      %p95 = por %p93, %p94
      %p96 = scmp.le.s32.totalorder 1, %s15
      %p97 = scmp.lt.s32.totalorder %s15, 3
      %p98 = pnand %p96, %p97
      %p99 = pneg %p98
      // Predicated region
      $region9: #{tpu_custom_call.1} parent=5 // pred_check
        _
      $region10: #{tpu_custom_call.1} parent=5 // pred_check_branch
        %101 = sbr.rel (%p98) target = $region12
      $region11: #{tpu_custom_call.1} parent=5 // pred_region
        %s102 = ssub.s32 %s15, 1
        // Predicated region
        $region13: #{tpu_custom_call.1} parent=11 // pred_check
          %p103 = pneg %p36
        $region14: #{tpu_custom_call.1} parent=11 // pred_check_branch
          %105 = sbr.rel (%p103) target = $region16
        $region15: #{tpu_custom_call.1} parent=11 // pred_region
          %s107 = ssub.s32 128, 128
          %108 = vsyncadd [#allocation3], %s107
          %s110 = sshll.u32 [#allocation2], 4
          %s111 = int_to_ptr.vmem [resolvable:$true] %s110
          %113 = dma.hbm_to_vmem [thread:$0]  %s0, 128, %s111, [#allocation3]
        $region16: #{tpu_custom_call.1} parent=11 // pred_fallthru
          _
      $region12: #{tpu_custom_call.1} parent=5 // pred_fallthru
        _
      %p114 = scmp.lt.s32.totalorder %s15, 2
      // Predicated region
      $region17: #{tpu_custom_call.1} parent=5 // pred_check
        %p115 = pneg %p114
      $region18: #{tpu_custom_call.1} parent=5 // pred_check_branch
        %117 = sbr.rel (%p115) target = $region20
      $region19: #{tpu_custom_call.1} parent=5 // pred_region
        // Predicated region
        $region21: #{tpu_custom_call.1} parent=19 // pred_check
          %p118 = pneg %p56
        $region22: #{tpu_custom_call.1} parent=19 // pred_check_branch
          %120 = sbr.rel (%p118) target = $region24
        $region23: #{tpu_custom_call.1} parent=19 // pred_region
          %s121 = sand.u32 %s46, 1
          %s122 = scalar_lea.sflag [#allocation6], %s121
          %s123 = sand.u32 %s46, 1
          %s124 = smul.addr %s123, 40
          %s125 = scalar_lea.vmem [#allocation5], %s124
          %s127 = ssub.s32 640, 640
          %128 = vsyncadd %s122, %s127
          %s129 = smul.addr %s15, 128
          %s130 = scalar_lea.hbm %s1, %s129
          %s131 = sshll.u32 %s125, 4
          %s132 = int_to_ptr.vmem [resolvable:$true] %s131
          %137 = dma.hbm_to_vmem [thread:$0]  %s130, 640, %s132, %s122, 256, 128, 8
        $region24: #{tpu_custom_call.1} parent=19 // pred_fallthru
          _
      $region20: #{tpu_custom_call.1} parent=5 // pred_fallthru
        _
      %p138 = scmp.le.s32.totalorder 1, %s15
      %p139 = scmp.lt.s32.totalorder %s15, 3
      %p140 = pnand %p138, %p139
      %p141 = pneg %p140
      // Predicated region
      $region25: #{tpu_custom_call.1} parent=5 // pred_check
        _
      $region26: #{tpu_custom_call.1} parent=5 // pred_check_branch
        %143 = sbr.rel (%p140) target = $region28
      $region27: #{tpu_custom_call.1} parent=5 // pred_region
        %s144 = ssub.s32 %s15, 1
        // Predicated region
        $region29: #{tpu_custom_call.1} parent=27 // pred_check
          %p145 = pneg %p36
        $region30: #{tpu_custom_call.1} parent=27 // pred_check_branch
          %147 = sbr.rel (%p145) target = $region32
        $region31: #{tpu_custom_call.1} parent=27 // pred_region
          %148 = dma.done [#allocation3], 128
        $region32: #{tpu_custom_call.1} parent=27 // pred_fallthru
          _
        %s149 = sand.u32 %s49, 1
        %s150 = scalar_lea.sflag [#allocation6], %s149
        %s151 = sand.u32 %s49, 1
        %s152 = smul.addr %s151, 40
        %s153 = scalar_lea.vmem [#allocation5], %s152
        // Predicated region
        $region33: #{tpu_custom_call.1} parent=27 // pred_check
          %p154 = pneg %p62
        $region34: #{tpu_custom_call.1} parent=27 // pred_check_branch
          %156 = sbr.rel (%p154) target = $region36
        $region35: #{tpu_custom_call.1} parent=27 // pred_region
          %157 = dma.done %s150, 640
        $region36: #{tpu_custom_call.1} parent=27 // pred_fallthru
          _
        %p158 = pneg %p36
        %p159 = pneg %p33
        %s160 = sand.u32 %s49, 1
        %s161 = scalar_lea.sflag [#allocation6], %s160
        %s162 = sand.u32 %s49, 1
        %s163 = smul.addr %s162, 40
        %s164 = scalar_lea.vmem [#allocation5], %s163
        %p165 = pneg %p62
        %p166 = pneg %p59
        %p167 = pneg %p88
        %p168 = pneg %p85
        %s169 = sand.u32 %s75, 1
        %s170 = scalar_lea.sflag [#allocation4], %s169
        %s171 = sand.u32 %s75, 1
        %s172 = smul.addr %s171, 8
        %s173 = scalar_lea.vmem [#allocation7], %s172
        %v174 = vld [vmem:[#allocation2] sm:$0xff]
        %v175 = vld [vmem:[%s153] sm:$0xff]
        %v176 = vld [vmem:[%s153 + $0x8] sm:$0xff]
        %v177 = vld [vmem:[%s153 + $0x10] sm:$0xff]
        %v178 = vld [vmem:[%s153 + $0x18] sm:$0xff]
        %v179 = vld [vmem:[%s153 + $0x20] sm:$0x1]
        %vm180 = vcmask 269312
        %v182 = vsel %vm180, %v174, 0
        %vm184 = vcmask 1040384
        %v186 = vsel %vm184, %v179, 0
        %188 = vmatprep.subr.mxu0 0.0
        %189 = vmatpush1.msra.mxu0 %v175
        %190 = vmatprep.subr.mxu0 0.0
        %191 = vmatpush1.msra.mxu0 %v176
        %192 = vmatprep.subr.mxu0 0.0
        %193 = vmatpush1.msra.mxu0 %v177
        %194 = vmatprep.subr.mxu0 0.0
        %195 = vmatpush1.msra.mxu0 %v178
        %196 = vmatprep.subr.mxu0 0.0
        %197 = vmatpush1.msra.mxu0 %v186
        %198 = vmatprep.subr.mxu0 0.0
        %199 = vmatpush1.msra.mxu0 0.0
        %200 = vmatprep.subr.mxu0 0.0
        %201 = vmatpush1.msra.mxu0 0.0
        %202 = vmatprep.subr.mxu0 0.0
        %203 = vmatpush1.msra.mxu0 0.0
        %204 = vmatprep.subr.mxu0 0.0
        %205 = vmatpush1.msra.mxu0 0.0
        %206 = vmatprep.subr.mxu0 0.0
        %207 = vmatpush1.msra.mxu0 0.0
        %208 = vmatprep.subr.mxu0 0.0
        %209 = vmatpush1.msra.mxu0 0.0
        %210 = vmatprep.subr.mxu0 0.0
        %211 = vmatpush1.msra.mxu0 0.0
        %212 = vmatprep.subr.mxu0 0.0
        %213 = vmatpush1.msra.mxu0 0.0
        %214 = vmatprep.subr.mxu0 0.0
        %215 = vmatpush1.msra.mxu0 0.0
        %216 = vmatprep.subr.mxu0 0.0
        %217 = vmatpush1.msra.mxu0 0.0
        %218 = vmatprep.subr.mxu0 0.0
        %219 = vmatpush1.msra.mxu0 0.0
        %220 = vmatprep.subr.mxu0 0.0
        %221 = vmatpush1.msra.mxu0 0.0
        %222 = vmatprep.subr.mxu0 0.0
        %223 = vmatpush1.msra.mxu0 0.0
        %224 = vmatprep.subr.mxu0 0.0
        %225 = vmatpush1.msra.mxu0 0.0
        %226 = vmatprep.subr.mxu0 0.0
        %227 = vmatpush1.msra.mxu0 0.0
        %228 = vmatprep.subr.mxu0 0.0
        %229 = vmatpush1.msra.mxu0 0.0
        %230 = vmatprep.subr.mxu0 0.0
        %231 = vmatpush1.msra.mxu0 0.0
        %232 = vmatprep.subr.mxu0 0.0
        %233 = vmatpush1.msra.mxu0 0.0
        %234 = vmatprep.subr.mxu0 0.0
        %235 = vmatpush1.msra.mxu0 0.0
        %236 = vmatprep.subr.mxu0 0.0
        %237 = vmatpush1.msra.mxu0 0.0
        %238 = vmatprep.subr.mxu0 0.0
        %239 = vmatpush1.msra.mxu0 0.0
        %240 = vmatprep.subr.mxu0 0.0
        %241 = vmatpush1.msra.mxu0 0.0
        %242 = vmatprep.subr.mxu0 0.0
        %243 = vmatpush1.msra.mxu0 0.0
        %244 = vmatprep.subr.mxu0 0.0
        %245 = vmatpush1.msra.mxu0 0.0
        %246 = vmatprep.subr.mxu0 0.0
        %247 = vmatpush1.msra.mxu0 0.0
        %248 = vmatprep.subr.mxu0 0.0
        %249 = vmatpush1.msra.mxu0 0.0
        %250 = vmatprep.subr.mxu0 0.0
        %251 = vmatpush1.msra.mxu0 0.0
        %252 = vmatprep.mubr.f32.mxu0 0.0
        %253 = vmatmul.mubr.f32.gmra.mrb[0].mxu0 %v182
        %v254 = vpop.f32.mrb[0].mxu0
        %v255 = vadd.f32 0.0, %v254
        %v256 = vpop.f32.mrb[0].mxu0
        %257 = vdwg.mxu0
        %258 = vst [vmem:[%s173] sm:$0xff] %v255
        %s259 = sand.u32 %s75, 1
        %s260 = scalar_lea.sflag [#allocation4], %s259
        %s261 = sand.u32 %s75, 1
        %s262 = smul.addr %s261, 8
        %s263 = scalar_lea.vmem [#allocation7], %s262
        // Predicated region
        $region37: #{tpu_custom_call.1} parent=27 // pred_check
          %p264 = pneg %p85
        $region38: #{tpu_custom_call.1} parent=27 // pred_check_branch
          %266 = sbr.rel (%p264) target = $region40
        $region39: #{tpu_custom_call.1} parent=27 // pred_region
          %s268 = ssub.s32 128, 128
          %269 = vsyncadd %s260, %s268
          %s270 = smul.addr %s20, 128
          %s271 = scalar_lea.hbm %s2, %s270
          %s273 = sshll.u32 %s263, 4
          %s274 = int_to_ptr.vmem [resolvable:$true] %s273
          %276 = dma.vmem_to_hbm [thread:$0]  %s274, 128, %s271, %s260
        $region40: #{tpu_custom_call.1} parent=27 // pred_fallthru
          _
      $region28: #{tpu_custom_call.1} parent=5 // pred_fallthru
        _
      %p277 = scmp.le.s32.totalorder 2, %s15
      // Predicated region
      $region41: #{tpu_custom_call.1} parent=5 // pred_check
        %p278 = pneg %p277
      $region42: #{tpu_custom_call.1} parent=5 // pred_check_branch
        %280 = sbr.rel (%p278) target = $region44
      $region43: #{tpu_custom_call.1} parent=5 // pred_region
        %s281 = ssub.s32 %s15, 2
        // Predicated region
        $region45: #{tpu_custom_call.1} parent=43 // pred_check
          %p282 = pneg %p91
        $region46: #{tpu_custom_call.1} parent=43 // pred_check_branch
          %284 = sbr.rel (%p282) target = $region48
        $region47: #{tpu_custom_call.1} parent=43 // pred_region
          %s285 = sand.u32 %s76, 1
          %s286 = scalar_lea.sflag [#allocation4], %s285
          %s287 = sand.u32 %s76, 1
          %s288 = smul.addr %s287, 8
          %s289 = scalar_lea.vmem [#allocation7], %s288
          %290 = dma.done %s286, 128
        $region48: #{tpu_custom_call.1} parent=43 // pred_fallthru
          _
      $region44: #{tpu_custom_call.1} parent=5 // pred_fallthru
        _
    $region6: #{tpu_custom_call.1} parent=1 // loop_footer
      %s19 = sadd.s32 1, %s15
    $region7: #{tpu_custom_call.1} parent=1 // loop_footer_branch
      %14 = sbr.rel target = $region3
    $region8: #{tpu_custom_call.1} parent=1 // loop_exit
      _
    %291 = vsyncpa [#allocation3], 1
    %s292 = scalar_lea.sflag [#allocation3], 1
    %293 = vsyncpa %s292, 1
    %294 = vsyncpa [#allocation6], 1
    %s295 = scalar_lea.sflag [#allocation6], 1
    %296 = vsyncpa %s295, 1
    %297 = vsyncpa [#allocation4], 1
    %s298 = scalar_lea.sflag [#allocation4], 1
    %299 = vsyncpa %s298, 1

</llo_original>
